<compile_context>
chip_gen: v6e
topology: v6e:2x2x1
jax: 0.10.0
libtpu: 0.0.40
codegen_flags: <defaults>
</compile_context>

<pallas_src>
import functools

import jax
import jax.numpy as jnp
from jax import lax
from jax.experimental import pallas as pl
from jax.experimental.pallas import tpu as pltpu


def _round_up(n: int, m: int) -> int:
    return ((n + m - 1) // m) * m


def _vmem_capacity_bytes() -> int:
    """Physical VMEM per TensorCore (128 MiB v5e/v6e, 64 MiB v7x)."""
    try:
        info = pltpu.get_tpu_info()
        cap = int(getattr(info, "vmem_capacity_bytes", 0) or 0)
        if cap > 0:
            return cap
    except Exception:
        pass
    return 128 << 20


def _num_tensorcores() -> int:
    """TensorCores per chip visible to one pallas_call (megacore sharding)."""
    try:
        kind = jax.devices()[0].device_kind.lower()
    except Exception:
        return 1
    if "v7" in kind or "v4" in kind:
        return 2
    if "v5" in kind and "lite" not in kind and "5e" not in kind:
        return 2  # v5p megacore
    return 1


def _choose_block_rows(n_rows, n_cols, itemsize, row_align, num_cores,
                       vmem_budget, target_tile_bytes=2 << 20):
    """Row-tile size: ~2 MiB per input buffer while keeping double-buffered
    inputs + f32 full-tile temporaries + the (8, C) accumulator under the
    chip-aware VMEM budget."""
    rows = max(row_align, target_tile_bytes // max(n_cols * itemsize, 1))

    def est(r):
        x_in = r * n_cols * itemsize      # one input buffer (native dtype)
        x_f32 = r * n_cols * 4            # one full-tile f32 temporary
        y_in = r * 4
        acc = 8 * n_cols * 4
        # 2x double-buffered inputs + ~6 f32 elementwise temporaries + acc.
        return 2 * (x_in + y_in) + 6 * x_f32 + acc

    while rows > row_align and est(rows) > vmem_budget:
        rows //= 2

    rows_per_core = -(-n_rows // num_cores)
    rows = min(rows, _round_up(rows_per_core, row_align))
    rows = max(row_align, (rows // row_align) * row_align)
    return int(rows)


def _hinge_kernel(x_ref, y_ref, o_ref, acc_ref, *,
                  n_rows, n_cols, block_rows, tiles_per_core, inv_count,
                  needs_mask):
    c = pl.program_id(0)      # TensorCore shard (parallel axis)
    ti = pl.program_id(1)     # row tile within the shard (reduction axis)

    @pl.when(ti == 0)
    def _init():
        acc_ref[...] = jnp.zeros_like(acc_ref)

    x = x_ref[...].astype(jnp.float32)          # (block_rows, C) cast in-kernel
    y = y_ref[...]                              # (block_rows, 1) int32 labels

    # Gather s_y = x[n, y[n]] via lane-iota == label folded into the row-sum.
    lane_idx = lax.broadcasted_iota(jnp.int32, x.shape, dimension=1)
    s_y = jnp.sum(jnp.where(lane_idx == y, x, 0.0), axis=-1, keepdims=True)

    # Fold the "+1" into the per-row scalar: narrow (block_rows, 1) op.
    thr = s_y - 1.0
    loss = jnp.maximum(x - thr, 0.0)            # (block_rows, C)

    def _fold(v):
        # Collapse to the (8, C) accumulator with pure-VPU slab adds; the
        # reshape aligns exactly with the f32 (8,128) sublane tiling.
        return jnp.sum(v.reshape(block_rows // 8, 8, n_cols), axis=0)

    if needs_mask:
        # Logical (unclamped) first row of this tile.
        row0 = (c * tiles_per_core + ti) * block_rows

        @pl.when(row0 + block_rows > n_rows)    # only tail / fully-padded tiles
        def _acc_masked():
            row = lax.broadcasted_iota(jnp.int32, (block_rows, 1), 0) + row0
            acc_ref[...] += _fold(jnp.where(row < n_rows, loss, 0.0))

        @pl.when(row0 + block_rows <= n_rows)   # common fast path: no select
        def _acc_full():
            acc_ref[...] += _fold(loss)
    else:
        acc_ref[...] += _fold(loss)

    @pl.when(ti == pl.num_programs(1) - 1)
    def _finalize():
        partial = jnp.sum(acc_ref[...]) * inv_count
        # Lane-dense (8, 128) output block: one unmasked vreg store per core.
        o_ref[...] = jnp.full((8, 128), partial, dtype=jnp.float32)


def hinge(x: jax.Array, y: jax.Array, *, block_rows=None, num_cores=None) -> jax.Array:
    """x: (N, C) logits (any float dtype), y: (N,) int labels -> scalar f32 loss."""
    n_rows, n_cols = x.shape
    y2d = y.reshape(n_rows, 1).astype(jnp.int32)

    itemsize = jnp.dtype(x.dtype).itemsize
    row_align = max(8, 32 // max(itemsize, 1))      # 8 rows f32, 16 rows bf16

    if num_cores is None:
        num_cores = _num_tensorcores()
    num_cores = max(1, int(num_cores))

    vmem_cap = _vmem_capacity_bytes()
    vmem_limit = min(3 * vmem_cap // 4, 96 << 20)   # scoped limit we request
    vmem_budget = vmem_limit - (8 << 20)            # headroom for Mosaic internals

    if block_rows is None:
        block_rows = _choose_block_rows(n_rows, n_cols, itemsize, row_align,
                                        num_cores, vmem_budget)
    block_rows = max(row_align, _round_up(int(block_rows), row_align))

    total_tiles = pl.cdiv(n_rows, block_rows)
    tiles_per_core = pl.cdiv(total_tiles, num_cores)
    covered_rows = num_cores * tiles_per_core * block_rows
    needs_mask = covered_rows != n_rows                      # any padded rows?
    needs_clamp = num_cores * tiles_per_core > total_tiles   # fully-OOB tiles?
    last_block = total_tiles - 1

    if needs_clamp:
        # Fully-out-of-range tiles re-read the last valid block (their rows are
        # zeroed by the tail mask in-kernel), keeping every DMA in bounds.
        def row_block(c, ti):
            return jnp.minimum(c * tiles_per_core + ti, last_block)
    else:
        def row_block(c, ti):
            return c * tiles_per_core + ti

    kernel = functools.partial(
        _hinge_kernel,
        n_rows=n_rows, n_cols=n_cols, block_rows=block_rows,
        tiles_per_core=tiles_per_core,
        inv_count=1.0 / float(n_rows * n_cols),
        needs_mask=needs_mask,
    )

    out = pl.pallas_call(
        kernel,
        out_shape=jax.ShapeDtypeStruct((num_cores * 8, 128), jnp.float32),
        grid=(num_cores, tiles_per_core),
        in_specs=[
            pl.BlockSpec((block_rows, n_cols), lambda c, ti: (row_block(c, ti), 0)),
            pl.BlockSpec((block_rows, 1), lambda c, ti: (row_block(c, ti), 0)),
        ],
        out_specs=pl.BlockSpec((8, 128), lambda c, ti: (c, 0)),
        scratch_shapes=[pltpu.VMEM((8, n_cols), jnp.float32)],
        compiler_params=pltpu.CompilerParams(
            dimension_semantics=("parallel", "arbitrary"),
            vmem_limit_bytes=vmem_limit,
        ),
        cost_estimate=pl.CostEstimate(
            flops=5 * n_rows * n_cols,
            transcendentals=0,
            bytes_accessed=n_rows * n_cols * itemsize + n_rows * 4
                           + num_cores * 8 * 128 * 4,
        ),
    )(x, y2d)

    # One partial mean (already divided by N*C) per TensorCore shard.
    partials = out[::8, 0]
    return jnp.sum(partials)


def hinge_ref(x, y):
    # Pure-JAX reference mirroring the PyTorch forward.
    xf = x.astype(jnp.float32)
    s_y = jnp.take_along_axis(xf, y.reshape(-1, 1), axis=-1)
    return jnp.mean(jnp.maximum(1.0 + xf - s_y, 0.0))


if __name__ == "__main__":
    key = jax.random.PRNGKey(0)
    kx, ky = jax.random.split(key)
    N, C = 20, 32                      # small: batch=20 (not a multiple of 8), classes=32
    x = jax.random.normal(kx, (N, C), dtype=jnp.float32)
    y = jax.random.randint(ky, (N,), 0, C, dtype=jnp.int32)

    ref = hinge_ref(x, y)

    # Auto-sized single (padded) tile: exercises the gated tail-row masking.
    out = jax.block_until_ready(hinge(x, y))
    assert jnp.allclose(out, ref, rtol=1e-5, atol=1e-5), (out, ref)

    # Small tile + forced 2-core sharded grid: exercises init/accumulate/finalize,
    # per-core partial sums, and clamped fully-out-of-range tail tiles.
    out_tiled = jax.block_until_ready(hinge(x, y, block_rows=8, num_cores=2))
    assert jnp.allclose(out_tiled, ref, rtol=1e-5, atol=1e-5), (out_tiled, ref)

    # Native bf16 input, cast in-kernel (no wrapper-side upcast / extra HBM pass).
    x_bf16 = x.astype(jnp.bfloat16)
    out_bf16 = jax.block_until_ready(hinge(x_bf16, y))
    ref_bf16 = hinge_ref(x_bf16, y)
    assert jnp.allclose(out_bf16, ref_bf16, rtol=1e-2, atol=1e-2), (out_bf16, ref_bf16)

    print("KERNEL_OK")
</pallas_src>

<mosaic_0001>
module attributes {stable_mosaic.version = 11 : i64} {
  func.func @_hinge_kernel(%arg0: i32, %arg1: i32, %arg2: memref<24x32xf32, #tpu.memory_space<vmem>>, %arg3: memref<24x1xi32, #tpu.memory_space<vmem>>, %arg4: memref<8x128xf32, #tpu.memory_space<vmem>>, %arg5: memref<8x32xf32, #tpu.memory_space<vmem>>) attributes {dimension_semantics = [#tpu.dimension_semantics<parallel>, #tpu.dimension_semantics<arbitrary>], iteration_bounds = array<i64: 1, 1>, scalar_prefetch = 0 : i64, scratch_operands = 1 : i64, tpu.core_type = #tpu.core_type<tc>, window_params = [{transform_indices = @transform_0, window_bounds = array<i64: 24, 32>}, {transform_indices = @transform_1, window_bounds = array<i64: 24, 1>}, {transform_indices = @transform_2, window_bounds = array<i64: 8, 128>}]} {
    %c0_i32 = arith.constant 0 : i32
    %0 = arith.cmpi eq, %arg1, %c0_i32 : i32
    %1 = arith.extui %0 : i1 to i32
    %c0_i32_0 = arith.constant 0 : i32
    %2 = arith.cmpi ne, %1, %c0_i32_0 : i32
    scf.if %2 {
      %cst_14 = arith.constant 0.000000e+00 : f32
      %32 = vector.broadcast %cst_14 : f32 to vector<8x32xf32>
      %c0_15 = arith.constant 0 : index
      %c0_16 = arith.constant 0 : index
      %33 = vector.load %arg5[%c0_15, %c0_16] : memref<8x32xf32, #tpu.memory_space<vmem>>, vector<8x32xf32>
      tpu.vector_store %arg5[%c0_15, %c0_16], %32 {strides = array<i32>} : memref<8x32xf32, #tpu.memory_space<vmem>>, vector<8x32xf32>,
    } else {
    }
    %c0 = arith.constant 0 : index
    %c0_1 = arith.constant 0 : index
    %3 = vector.load %arg2[%c0, %c0_1] : memref<24x32xf32, #tpu.memory_space<vmem>>, vector<24x32xf32>
    %c0_2 = arith.constant 0 : index
    %c0_3 = arith.constant 0 : index
    %4 = vector.load %arg3[%c0_2, %c0_3] : memref<24x1xi32, #tpu.memory_space<vmem>>, vector<24x1xi32>
    %5 = tpu.iota {dimensions = array<i32: 1>} : vector<24x32xi32>
    %6 = vector.broadcast %4 : vector<24x1xi32> to vector<24x32xi32>
    %7 = arith.cmpi eq, %5, %6 : vector<24x32xi32>
    %cst = arith.constant 0.000000e+00 : f32
    %8 = vector.broadcast %cst : f32 to vector<24x32xf32>
    %9 = arith.select %7, %3, %8 : vector<24x32xi1>, vector<24x32xf32>
    %cst_4 = arith.constant dense<0.000000e+00> : vector<24xf32>
    %10 = vector.multi_reduction <add>, %9, %cst_4 [1] : vector<24x32xf32> to vector<24xf32>
    %11 = vector.shape_cast %10 : vector<24xf32> to vector<24x1xf32>
    %cst_5 = arith.constant 1.000000e+00 : f32
    %12 = vector.broadcast %cst_5 : f32 to vector<24x1xf32>
    %13 = arith.subf %11, %12 : vector<24x1xf32>
    %14 = vector.broadcast %13 : vector<24x1xf32> to vector<24x32xf32>
    %15 = arith.subf %3, %14 : vector<24x32xf32>
    %cst_6 = arith.constant 0.000000e+00 : f32
    %16 = vector.broadcast %cst_6 : f32 to vector<24x32xf32>
    %17 = arith.maximumf %15, %16 : vector<24x32xf32>
    %c1_i32 = arith.constant 1 : i32
    %18 = arith.muli %arg0, %c1_i32 : i32
    %19 = arith.addi %18, %arg1 : i32
    %c24_i32 = arith.constant 24 : i32
    %20 = arith.muli %19, %c24_i32 : i32
    %c24_i32_7 = arith.constant 24 : i32
    %21 = arith.addi %20, %c24_i32_7 : i32
    %c20_i32 = arith.constant 20 : i32
    %22 = arith.cmpi sgt, %21, %c20_i32 : i32
    %23 = arith.extui %22 : i1 to i32
    %c0_i32_8 = arith.constant 0 : i32
    %24 = arith.cmpi ne, %23, %c0_i32_8 : i32
    scf.if %24 {
      %32 = tpu.iota {dimensions = array<i32: 0>} : vector<24x1xi32>
      %33 = vector.broadcast %20 : i32 to vector<24x1xi32>
      %34 = arith.addi %32, %33 : vector<24x1xi32>
      %c0_14 = arith.constant 0 : index
      %c0_15 = arith.constant 0 : index
      %35 = vector.load %arg5[%c0_14, %c0_15] : memref<8x32xf32, #tpu.memory_space<vmem>>, vector<8x32xf32>
      %c20_i32_16 = arith.constant 20 : i32
      %36 = vector.broadcast %c20_i32_16 : i32 to vector<24x1xi32>
      %37 = arith.cmpi slt, %34, %36 : vector<24x1xi32>
      %cst_17 = arith.constant 0.000000e+00 : f32
      %38 = vector.shape_cast %37 : vector<24x1xi1> to vector<24x1xi1>
      %39 = vector.broadcast %38 : vector<24x1xi1> to vector<24x32xi1>
      %40 = vector.broadcast %cst_17 : f32 to vector<24x32xf32>
      %41 = arith.select %39, %17, %40 : vector<24x32xi1>, vector<24x32xf32>
      %42 = vector.shape_cast %41 : vector<24x32xf32> to vector<3x8x32xf32>
      %cst_18 = arith.constant dense<0.000000e+00> : vector<8x32xf32>
      %43 = vector.multi_reduction <add>, %42, %cst_18 [0] : vector<3x8x32xf32> to vector<8x32xf32>
      %44 = arith.addf %35, %43 : vector<8x32xf32>
      %c0_19 = arith.constant 0 : index
      %c0_20 = arith.constant 0 : index
      %45 = vector.load %arg5[%c0_19, %c0_20] : memref<8x32xf32, #tpu.memory_space<vmem>>, vector<8x32xf32>
      tpu.vector_store %arg5[%c0_19, %c0_20], %44 {strides = array<i32>} : memref<8x32xf32, #tpu.memory_space<vmem>>, vector<8x32xf32>,
    } else {
    }
    %c24_i32_9 = arith.constant 24 : i32
    %25 = arith.addi %20, %c24_i32_9 : i32
    %c20_i32_10 = arith.constant 20 : i32
    %26 = arith.cmpi sle, %25, %c20_i32_10 : i32
    %27 = arith.extui %26 : i1 to i32
    %c0_i32_11 = arith.constant 0 : i32
    %28 = arith.cmpi ne, %27, %c0_i32_11 : i32
    scf.if %28 {
      %c0_14 = arith.constant 0 : index
      %c0_15 = arith.constant 0 : index
      %32 = vector.load %arg5[%c0_14, %c0_15] : memref<8x32xf32, #tpu.memory_space<vmem>>, vector<8x32xf32>
      %33 = vector.shape_cast %17 : vector<24x32xf32> to vector<3x8x32xf32>
      %cst_16 = arith.constant dense<0.000000e+00> : vector<8x32xf32>
      %34 = vector.multi_reduction <add>, %33, %cst_16 [0] : vector<3x8x32xf32> to vector<8x32xf32>
      %35 = arith.addf %32, %34 : vector<8x32xf32>
      %c0_17 = arith.constant 0 : index
      %c0_18 = arith.constant 0 : index
      %36 = vector.load %arg5[%c0_17, %c0_18] : memref<8x32xf32, #tpu.memory_space<vmem>>, vector<8x32xf32>
      tpu.vector_store %arg5[%c0_17, %c0_18], %35 {strides = array<i32>} : memref<8x32xf32, #tpu.memory_space<vmem>>, vector<8x32xf32>,
    } else {
    }
    %c0_i32_12 = arith.constant 0 : i32
    %29 = arith.cmpi eq, %arg1, %c0_i32_12 : i32
    %30 = arith.extui %29 : i1 to i32
    %c0_i32_13 = arith.constant 0 : i32
    %31 = arith.cmpi ne, %30, %c0_i32_13 : i32
    scf.if %31 {
      %c0_14 = arith.constant 0 : index
      %c0_15 = arith.constant 0 : index
      %32 = vector.load %arg5[%c0_14, %c0_15] : memref<8x32xf32, #tpu.memory_space<vmem>>, vector<8x32xf32>
      %33 = vector.shape_cast %32 : vector<8x32xf32> to vector<1x8x32xf32>
      %cst_16 = arith.constant dense<0.000000e+00> : vector<1xf32>
      %34 = vector.multi_reduction <add>, %33, %cst_16 [1, 2] : vector<1x8x32xf32> to vector<1xf32>
      %35 = vector.shape_cast %34 : vector<1xf32> to vector<1x1x1xf32>
      %36 = vector.extract %35[0, 0, 0] : f32 from vector<1x1x1xf32>
      %cst_17 = arith.constant 1.562500e-03 : f32
      %37 = arith.mulf %36, %cst_17 : f32
      %38 = vector.broadcast %37 : f32 to vector<8x128xf32>
      %c0_18 = arith.constant 0 : index
      %c0_19 = arith.constant 0 : index
      %39 = vector.load %arg4[%c0_18, %c0_19] : memref<8x128xf32, #tpu.memory_space<vmem>>, vector<8x128xf32>
      tpu.vector_store %arg4[%c0_18, %c0_19], %38 {strides = array<i32>} : memref<8x128xf32, #tpu.memory_space<vmem>>, vector<8x128xf32>,
    } else {
    }
    return
  }
  func.func @transform_0(%arg0: i32, %arg1: i32) -> (i32, i32) {
    %c1_i32 = arith.constant 1 : i32
    %0 = arith.muli %arg0, %c1_i32 : i32
    %1 = arith.addi %0, %arg1 : i32
    %c0_i32 = arith.constant 0 : i32
    %c0_i32_0 = arith.constant 0 : i32
    return %1, %c0_i32 : i32, i32
  }
  func.func @transform_1(%arg0: i32, %arg1: i32) -> (i32, i32) {
    %c1_i32 = arith.constant 1 : i32
    %0 = arith.muli %arg0, %c1_i32 : i32
    %1 = arith.addi %0, %arg1 : i32
    %c0_i32 = arith.constant 0 : i32
    %c0_i32_0 = arith.constant 0 : i32
    return %1, %c0_i32 : i32, i32
  }
  func.func @transform_2(%arg0: i32, %arg1: i32) -> (i32, i32) {
    %c0_i32 = arith.constant 0 : i32
    %c0_i32_0 = arith.constant 0 : i32
    return %arg0, %c0_i32 : i32, i32
  }
}

</mosaic_0001>

<llo_original>
// kernel: tpu_custom_call.1
$region0: #{tpu_custom_call.1}
  #allocation0 [shape = 'u32[]', space=smem, size = 0x4, offset = 0x4, fixed_abs, tag = 'smem constant byte address 0x4 - core index']
  #allocation1 [shape = 'u32[144,128]{1,0:T(1,128)}', space=vmem, size = 0x12000, scoped, tag = 'internal scratch']
  #allocation2 [shape = 'f32[8,32]{1,0:T(8,128)}', space=vmem, size = 0x1000, scoped, tag = 'scratch operand']
  %s0 = inlined_call_operand.vmem [shape: f32[20,32], index: 0, kind: input, shape index: {}]
  %s1 = inlined_call_operand.vmem [shape: s32[20,1], index: 1, kind: input, shape index: {}]
  %s2 = inlined_call_operand.hbm [shape: f32[8,128], index: 2, kind: output, shape index: {}]
  %s3 = sld [smem:[#allocation0]]
  $region34: #{tpu_custom_call.1} parent=0
    _
  %s5 = ssub.s32 1, %s3
  %s6 = scalar_select 0, %s5, %s3
  $region1: #{tpu_custom_call.1} parent=0
    #allocation3 [shape = 'u8[4096]{0}', space=vmem, size = 0x1000, scoped, tag = 'output window, operand 0, single buffered']
    #allocation4 [shape = 's32[1]{0}', space=sflag, size = 0x4, scoped, tag = 'scoped memory for tpu_custom_call.1']
    %7 = vsyncpa [#allocation4], 0
    // Predicated region
    $region2: #{tpu_custom_call.1} parent=1 // pred_check
      _
    $region3: #{tpu_custom_call.1} parent=1 // pred_check_branch
      %9 = sbr.rel (0) target = $region5
    $region4: #{tpu_custom_call.1} parent=1 // pred_region
      %s10 = sadd.s32 0, 0
      %s11 = smul.u32 3, %s10
      %p12 = scmp.lt.s32.totalorder %s11, 2
      %s13 = scalar_select %p12, %s11, 2
      %s14 = smul.addr %s13, 8
      %s15 = scalar_lea.vmem %s0, %s14
      %s16 = sadd.s32 0, 0
      %s17 = smul.u32 3, %s16
    $region5: #{tpu_custom_call.1} parent=1 // pred_fallthru
      _
    // Predicated region
    $region6: #{tpu_custom_call.1} parent=1 // pred_check
      _
    $region7: #{tpu_custom_call.1} parent=1 // pred_check_branch
      %19 = sbr.rel (0) target = $region9
    $region8: #{tpu_custom_call.1} parent=1 // pred_region
      %s20 = sadd.s32 0, 0
      %s21 = smul.u32 3, %s20
      %p22 = scmp.lt.s32.totalorder %s21, 2
      %s23 = scalar_select %p22, %s21, 2
      %s24 = smul.addr %s23, 8
      %s25 = scalar_lea.vmem %s1, %s24
      %s26 = sadd.s32 0, 0
      %s27 = smul.u32 3, %s26
    $region9: #{tpu_custom_call.1} parent=1 // pred_fallthru
      _
    %s28 = sadd.s32 0, 0
    %s29 = smul.u32 3, %s28
    %p30 = scmp.lt.s32.totalorder %s29, 2
    %s31 = scalar_select %p30, %s29, 2
    %s32 = smul.addr %s31, 8
    %s33 = scalar_lea.vmem %s0, %s32
    %s34 = sadd.s32 0, 0
    %s35 = smul.u32 3, %s34
    %p36 = scmp.lt.s32.totalorder %s35, 2
    %s37 = scalar_select %p36, %s35, 2
    %s38 = smul.addr %s37, 8
    %s39 = scalar_lea.vmem %s1, %s38
    %s40 = sadd.s32 0, 0
    %s41 = smul.u32 3, %s40
    %p42 = scmp.lt.s32.totalorder %s41, 2
    %s43 = scalar_select %p42, %s41, 2
    %s44 = smul.addr %s43, 8
    %s45 = scalar_lea.vmem %s0, %s44
    %s46 = sadd.s32 0, 0
    %s47 = smul.u32 3, %s46
    %s48 = sadd.s32 0, 0
    %s49 = smul.u32 3, %s48
    %p50 = scmp.lt.s32.totalorder %s49, 2
    %s51 = scalar_select %p50, %s49, 2
    %s52 = smul.addr %s51, 8
    %s53 = scalar_lea.vmem %s1, %s52
    %s54 = sadd.s32 0, 0
    %s55 = smul.u32 3, %s54
    %p56 = scmp.eq.s32.totalorder 0, 0
    // Predicated region
    $region10: #{tpu_custom_call.1} parent=1 // pred_check
      %p57 = pneg %p56
    $region11: #{tpu_custom_call.1} parent=1 // pred_check_branch
      %59 = sbr.rel (%p57) target = $region13
    $region12: #{tpu_custom_call.1} parent=1 // pred_region
      %vm60 = vcmask 261120
      %61 = vst.msk [vmem:[#allocation2] sm:$0xff] %vm60, 0.0
    $region13: #{tpu_custom_call.1} parent=1 // pred_fallthru
      _
    %v62 = vld [vmem:[%s45] sm:$0xff]
    %v63 = vld [vmem:[%s45 + $0x8] sm:$0xff]
    %v64 = vld [vmem:[%s45 + $0x10] sm:$0xff]
    %v65 = vld [vmem:[%s53] sm:$0xff]
    %v66 = vld [vmem:[%s53 + $0x8] sm:$0xff]
    %v67 = vld [vmem:[%s53 + $0x10] sm:$0xff]
    %v68 = vlaneseq
    %v69 = vand.u32 %v68, 127
    %70 = vset.pattern.permute.xlu0 0
    %71 = vperm.xlu0 %70, %v65
    %v72 = vpop.permute.xlu0 %71
    %73 = vset.pattern.permute.xlu0 0
    %74 = vperm.xlu0 %73, %v66
    %v75 = vpop.permute.xlu0 %74
    %76 = vset.pattern.permute.xlu0 0
    %77 = vperm.xlu0 %76, %v67
    %v78 = vpop.permute.xlu0 %77
    %vm79 = vcmp.eq.s32.totalorder %v69, %v72
    %vm80 = vcmp.eq.s32.totalorder %v69, %v75
    %vm81 = vcmp.eq.s32.totalorder %v69, %v78
    %v82 = vsel %vm79, %v62, 0.0
    %v83 = vsel %vm80, %v63, 0.0
    %v84 = vsel %vm81, %v64, 0.0
    %vm85 = vcmask 261120
    %v86 = vsel %vm85, %v82, 0.0
    %87 = vadd.xlane.f32.xlu0 %v86
    %v88 = vpop.xlane.xlu0 %87
    %v89 = vsel %vm85, %v83, 0.0
    %90 = vadd.xlane.f32.xlu0 %v89
    %v91 = vpop.xlane.xlu0 %90
    %v92 = vsel %vm85, %v84, 0.0
    %93 = vadd.xlane.f32.xlu0 %v92
    %v94 = vpop.xlane.xlu0 %93
    %v95 = vsub.f32 %v88, 1.0
    %v96 = vsub.f32 %v91, 1.0
    %v97 = vsub.f32 %v94, 1.0
    %v98 = vsub.f32 %v62, %v95
    %v99 = vsub.f32 %v63, %v96
    %v100 = vsub.f32 %v64, %v97
    %v101 = vmax.f32 %v98, 0.0
    %v102 = vmax.f32 %v99, 0.0
    %v103 = vmax.f32 %v100, 0.0
    %s104 = sadd.s32 0, 0
    %s105 = smul.u32 %s104, 24
    %s106 = sadd.s32 %s105, 24
    %p107 = scmp.gt.s32.totalorder %s106, 20
    // Predicated region
    $region14: #{tpu_custom_call.1} parent=1 // pred_check
      %p108 = pneg %p107
    $region15: #{tpu_custom_call.1} parent=1 // pred_check_branch
      %110 = sbr.rel (%p108) target = $region17
    $region16: #{tpu_custom_call.1} parent=1 // pred_region
      %v111 = vlaneseq
      %v112 = vshrl.u32 %v111, 7
      %v113 = vadd.s32 %v112, 8
      %v114 = vadd.s32 %v112, 16
      %v115 = vstv %s105
      %v116 = vadd.s32 %v112, %v115
      %v117 = vadd.s32 %v113, %v115
      %v118 = vadd.s32 %v114, %v115
      %v119 = vld [vmem:[#allocation2] sm:$0xff]
      %vm120 = vcmp.lt.s32.totalorder %v116, 20
      %vm121 = vcmp.lt.s32.totalorder %v117, 20
      %vm122 = vcmp.lt.s32.totalorder %v118, 20
      %v123 = vsel %vm120, 1, 0
      %v124 = vsel %vm121, 1, 0
      %v125 = vsel %vm122, 1, 0
      %vm126 = vcmp.eq.s32.totalorder %v123, 1
      %vm127 = vcmp.eq.s32.totalorder %v124, 1
      %vm128 = vcmp.eq.s32.totalorder %v125, 1
      %v129 = vsel %vm126, %v101, 0.0
      %v130 = vsel %vm127, %v102, 0.0
      %v131 = vsel %vm128, %v103, 0.0
      %v132 = vsel %vm85, %v129, 0.0
      %v133 = vsel %vm85, %v130, 0.0
      %v134 = vadd.f32 %v132, %v133
      %v135 = vsel %vm85, %v131, 0.0
      %v136 = vadd.f32 %v134, %v135
      %v137 = vadd.f32 %v119, %v136
      %138 = vst.msk [vmem:[#allocation2] sm:$0xff] %vm85, %v137
    $region17: #{tpu_custom_call.1} parent=1 // pred_fallthru
      _
    %p139 = scmp.le.s32.totalorder %s106, 20
    // Predicated region
    $region18: #{tpu_custom_call.1} parent=1 // pred_check
      %p140 = pneg %p139
    $region19: #{tpu_custom_call.1} parent=1 // pred_check_branch
      %142 = sbr.rel (%p140) target = $region21
    $region20: #{tpu_custom_call.1} parent=1 // pred_region
      %v143 = vld [vmem:[#allocation2] sm:$0xff]
      %v144 = vsel %vm85, %v101, 0.0
      %v145 = vsel %vm85, %v102, 0.0
      %v146 = vadd.f32 %v144, %v145
      %v147 = vsel %vm85, %v103, 0.0
      %v148 = vadd.f32 %v146, %v147
      %v149 = vadd.f32 %v143, %v148
      %150 = vst.msk [vmem:[#allocation2] sm:$0xff] %vm85, %v149
    $region21: #{tpu_custom_call.1} parent=1 // pred_fallthru
      _
    // Predicated region
    $region22: #{tpu_custom_call.1} parent=1 // pred_check
      %p151 = pneg %p56
    $region23: #{tpu_custom_call.1} parent=1 // pred_check_branch
      %153 = sbr.rel (%p151) target = $region25
    $region24: #{tpu_custom_call.1} parent=1 // pred_region
      %v154 = vld [vmem:[#allocation2] sm:$0xff]
      %v155 = vsel %vm85, %v154, 0.0
      %156 = vadd.xlane.f32.xlu0 %v155
      %v157 = vpop.xlane.xlu0 %156
      %v158 = vrot.slane %v157, 4
      %v159 = vadd.f32 %v157, %v158
      %v160 = vrot.slane %v159, 2
      %v161 = vadd.f32 %v159, %v160
      %v162 = vrot.slane %v161, 1
      %v163 = vadd.f32 %v161, %v162
      %s164 = vtos %v163
      %s165 = smul.f32 %s164, 0.0015625
      %v166 = vstv %s165
      %167 = vst [vmem:[#allocation3] sm:$0xff] %v166
    $region25: #{tpu_custom_call.1} parent=1 // pred_fallthru
      _
    // Predicated region
    $region26: #{tpu_custom_call.1} parent=1 // pred_check
      _
    $region27: #{tpu_custom_call.1} parent=1 // pred_check_branch
      %169 = sbr.rel (0) target = $region29
    $region28: #{tpu_custom_call.1} parent=1 // pred_region
      %s171 = ssub.s32 128, 128
      %172 = vsyncadd [#allocation4], %s171
      %s174 = sshll.u32 [#allocation3], 4
      %s175 = int_to_ptr.vmem [resolvable:$true] %s174
      %177 = dma.vmem_to_hbm [thread:$0]  %s175, 128, %s2, [#allocation4]
    $region29: #{tpu_custom_call.1} parent=1 // pred_fallthru
      _
    // Predicated region
    $region30: #{tpu_custom_call.1} parent=1 // pred_check
      _
    $region31: #{tpu_custom_call.1} parent=1 // pred_check_branch
      %179 = sbr.rel (0) target = $region33
    $region32: #{tpu_custom_call.1} parent=1 // pred_region
      %180 = dma.done [#allocation4], 128
    $region33: #{tpu_custom_call.1} parent=1 // pred_fallthru
      _
    %181 = vsyncpa [#allocation4], 1

</llo_original>
